<compile_context>
chip_gen: v7x
topology: tpu7x:2x2x1
jax: 0.10.0
libtpu: 0.0.40
codegen_flags: <defaults>
</compile_context>

<pallas_src>
import functools
import math

import jax
import jax.numpy as jnp
from jax.experimental import pallas as pl
from jax.experimental.pallas import tpu as pltpu


def _crop_copy_kernel(in_ref, out_ref, *, h_lo, w_lo):
    # in_ref : (g_blk, H_blk_in,  W_in ) VMEM block
    # out_ref: (g_blk, H_blk_out, W_out) VMEM block
    _, h_out, w_out = out_ref.shape
    h_sl = slice(None) if h_lo is None else slice(h_lo, h_lo + h_out)
    w_sl = slice(None) if w_lo is None else slice(w_lo, w_lo + w_out)
    # Direct sliced load from the Ref view (only the cropped window is read), then a
    # single full-block store.
    out_ref[...] = in_ref[:, h_sl, w_sl]


def _divisors(n):
    return [d for d in range(1, n + 1) if n % d == 0]


def _vmem_capacity_bytes():
    """Physical VMEM per TensorCore; conservative fallback if the query fails."""
    try:
        cap = getattr(pltpu.get_tpu_info(), "vmem_capacity_bytes", None)
        if cap:
            return int(cap)
    except Exception:
        pass
    return 64 * 1024 * 1024  # v7x per-TC VMEM (smallest of the target generations)


def _sublane_multiple(itemsize):
    # Second-to-last-dim tile multiple for packed dtypes: 8 (32-bit), 16 (16-bit), 32 (8-bit).
    return 8 * max(1, 4 // int(itemsize))


def _pick_g_block(g_total, h_steps, per_g_bytes, budget_bytes,
                  min_block_bytes=1 << 20, target_steps=8):
    """Pick the fused-plane block size along the collapsed (N*C) axis.

    Priority: (1) double-buffered in+out blocks fit the VMEM budget,
              (2) each block >= ~1 MiB (amortize per-step + DMA issue overhead),
              (3) >= ~8 total grid steps (>= 2 per v7x TensorCore + pipeline depth).
    Tiny problems collapse to a single step.
    """
    divs = _divisors(g_total)
    fits = [d for d in divs if 2 * d * per_g_bytes <= budget_bytes] or [1]
    good = [d for d in fits
            if (g_total // d) * h_steps >= target_steps
            and d * per_g_bytes >= min_block_bytes]
    if good:
        return max(good)                     # biggest blocks that still leave enough steps
    ge_floor = [d for d in fits if d * per_g_bytes >= min_block_bytes]
    if ge_floor:
        return min(ge_floor)                 # block-size floor wins; maximize steps under it
    return max(fits)                         # whole problem is tiny; fewest (biggest) steps


def crop(in_val: jax.Array, mimicee_shape) -> jax.Array:
    """Center-crop `in_val` (NCHW) spatially to mimicee's H/W (PyTorch Crop semantics)."""
    n, c, h_in, w_in = in_val.shape
    off_h = mimicee_shape[2] // 2
    off_w = mimicee_shape[3] // 2
    h0 = h_in // 2 - off_h
    w0 = w_in // 2 - off_w
    h_out = 2 * off_h
    w_out = 2 * off_w

    # --- correctness guards (Pallas does no runtime bounds checks on VMEM refs) ---
    if h0 < 0 or w0 < 0 or h0 + h_out > h_in or w0 + w_out > w_in:
        raise ValueError(
            f"mimicee spatial shape {tuple(mimicee_shape[2:])} does not fit inside "
            f"in_val spatial shape {(h_in, w_in)} for a centered crop.")
    if n == 0 or c == 0 or h_out == 0 or w_out == 0:
        # Degenerate empty crop: zero-size block shapes are not representable.
        return jnp.zeros((n, c, h_out, w_out), in_val.dtype)

    g = n * c
    x3 = in_val.reshape(g, h_in, w_in)          # collapse batch+channels (layout-free)
    itemsize = jnp.dtype(in_val.dtype).itemsize
    sub = _sublane_multiple(itemsize)

    crop_h = (h0 != 0) or (h_out != h_in)
    crop_w = (w0 != 0) or (w_out != w_in)

    # Aligned fast path: push the H crop into the input DMA via a block-index offset.
    aligned_h = crop_h and (h0 % sub == 0) and (h_out % sub == 0)

    if aligned_h:
        bh = math.gcd(h0, h_out) if h0 else h_out   # multiple of `sub` by construction
        h_steps = h_out // bh
        in_h_blk, out_h_blk = bh, bh
        h_lo_k = None                               # H crop already done by the DMA
        read_rows = h_out                           # only cropped rows leave HBM
    else:
        bh = None
        h_steps = 1
        in_h_blk, out_h_blk = h_in, h_out
        h_lo_k = h0 if crop_h else None
        read_rows = h_in
    w_lo_k = w0 if crop_w else None

    per_g_bytes = (in_h_blk * w_in + out_h_blk * w_out) * itemsize
    vmem_cap = _vmem_capacity_bytes()
    budget = max(8 << 20, min(48 << 20, vmem_cap // 3))
    g_blk = _pick_g_block(g, h_steps, per_g_bytes, budget)

    kernel = functools.partial(_crop_copy_kernel, h_lo=h_lo_k, w_lo=w_lo_k)

    if aligned_h:
        h_off_blocks = h0 // bh
        grid = (g // g_blk, h_steps)
        in_spec = pl.BlockSpec((g_blk, bh, w_in),
                               lambda i, j: (i, j + h_off_blocks, 0))
        out_spec = pl.BlockSpec((g_blk, bh, w_out), lambda i, j: (i, j, 0))
        dim_sem = ("parallel", "parallel")
    else:
        grid = (g // g_blk,)
        in_spec = pl.BlockSpec((g_blk, h_in, w_in), lambda i: (i, 0, 0))
        out_spec = pl.BlockSpec((g_blk, h_out, w_out), lambda i: (i, 0, 0))
        dim_sem = ("parallel",)

    working_set = 2 * g_blk * per_g_bytes           # double-buffered in + out blocks
    vmem_limit = min(max(working_set + (4 << 20), 24 << 20), (vmem_cap * 9) // 10)
    vmem_limit = int(max(vmem_limit, working_set + (2 << 20)))

    read_bytes = g * read_rows * w_in * itemsize
    write_bytes = g * h_out * w_out * itemsize

    out3 = pl.pallas_call(
        kernel,
        out_shape=jax.ShapeDtypeStruct((g, h_out, w_out), in_val.dtype),
        grid_spec=pltpu.PrefetchScalarGridSpec(
            num_scalar_prefetch=0,
            grid=grid,
            in_specs=[in_spec],
            out_specs=out_spec,
        ),
        compiler_params=pltpu.CompilerParams(
            dimension_semantics=dim_sem,
            vmem_limit_bytes=vmem_limit,
        ),
        cost_estimate=pl.CostEstimate(
            flops=0,
            transcendentals=0,
            bytes_accessed=int(read_bytes + write_bytes),
        ),
    )(x3)
    return out3.reshape(n, c, h_out, w_out)


def _reference_crop(in_val, mimicee_shape):
    c2, o2 = in_val.shape[2] // 2, mimicee_shape[2] // 2
    c3, o3 = in_val.shape[3] // 2, mimicee_shape[3] // 2
    return in_val[:, :, c2 - o2:c2 + o2, c3 - o3:c3 + o3]


if __name__ == "__main__":
    key = jax.random.PRNGKey(0)
    k1, k2, k3, k4 = jax.random.split(key, 4)

    cases = [
        # (input shape, mimicee shape) — covers both kernel variants:
        ((2, 4, 16, 16), (2, 4, 8, 8)),    # unaligned H crop + W crop (fallback path)
        ((2, 8, 16, 16), (2, 8, 8, 16)),   # unaligned H-only crop (fallback, pure H slice)
        ((2, 4, 32, 32), (2, 4, 16, 16)),  # aligned H crop pushed into DMA + in-kernel W crop
        ((1, 8, 32, 16), (1, 8, 16, 16)),  # aligned H crop pushed into DMA, no W crop (pure copy)
    ]

    for k, (in_shape, mim_shape) in zip((k1, k2, k3, k4), cases):
        in_val = jax.random.normal(k, in_shape, dtype=jnp.float32)
        out = jax.block_until_ready(crop(in_val, mim_shape))
        ref = _reference_crop(in_val, mim_shape)
        assert out.shape == ref.shape, (in_shape, mim_shape, out.shape, ref.shape)
        assert out.dtype == ref.dtype
        assert bool(jnp.array_equal(out, ref)), (in_shape, mim_shape)

    print("KERNEL_OK")
</pallas_src>

<mosaic_0001>
module attributes {stable_mosaic.version = 11 : i64} {
  func.func @_crop_copy_kernel(%arg0: i32, %arg1: memref<8x16x16xf32, #tpu.memory_space<vmem>>, %arg2: memref<8x8x8xf32, #tpu.memory_space<vmem>>) attributes {dimension_semantics = [#tpu.dimension_semantics<parallel>], iteration_bounds = array<i64: 1>, scalar_prefetch = 0 : i64, scratch_operands = 0 : i64, tpu.core_type = #tpu.core_type<tc>, window_params = [{transform_indices = @transform_0, window_bounds = array<i64: 8, 16, 16>}, {transform_indices = @transform_1, window_bounds = array<i64: 8, 8, 8>}]} {
    %c0 = arith.constant 0 : index
    %c4 = arith.constant 4 : index
    %c4_0 = arith.constant 4 : index
    %0 = vector.load %arg1[%c0, %c4, %c4_0] : memref<8x16x16xf32, #tpu.memory_space<vmem>>, vector<8x8x8xf32>
    %c0_1 = arith.constant 0 : index
    %c0_2 = arith.constant 0 : index
    %c0_3 = arith.constant 0 : index
    %1 = vector.load %arg2[%c0_1, %c0_2, %c0_3] : memref<8x8x8xf32, #tpu.memory_space<vmem>>, vector<8x8x8xf32>
    tpu.vector_store %arg2[%c0_1, %c0_2, %c0_3], %0 {strides = array<i32>} : memref<8x8x8xf32, #tpu.memory_space<vmem>>, vector<8x8x8xf32>,
    return
  }
  func.func @transform_0(%arg0: i32) -> (i32, i32, i32) {
    %c0_i32 = arith.constant 0 : i32
    %c0_i32_0 = arith.constant 0 : i32
    %c0_i32_1 = arith.constant 0 : i32
    return %arg0, %c0_i32, %c0_i32_0 : i32, i32, i32
  }
  func.func @transform_1(%arg0: i32) -> (i32, i32, i32) {
    %c0_i32 = arith.constant 0 : i32
    %c0_i32_0 = arith.constant 0 : i32
    %c0_i32_1 = arith.constant 0 : i32
    return %arg0, %c0_i32, %c0_i32_0 : i32, i32, i32
  }
}

</mosaic_0001>

<llo_original>
// kernel: tpu_custom_call.1
$region0: #{tpu_custom_call.1}
  #allocation0 [shape = 'u32[]', space=smem, size = 0x4, offset = 0x4, fixed_abs, tag = 'smem constant byte address 0x4 - core index']
  #allocation1 [shape = 'u32[144,128]{1,0:T(1,128)}', space=vmem, size = 0x12000, scoped, tag = 'internal scratch']
  %s0 = inlined_call_operand.hbm [shape: f32[8,16,16], index: 0, kind: input, shape index: {}]
  %s1 = inlined_call_operand.hbm [shape: f32[8,8,8], index: 1, kind: output, shape index: {}]
  %s2 = sld [smem:[#allocation0]]
  $region18: #{tpu_custom_call.1} parent=0
    _
  %s4 = ssub.s32 1, %s2
  %s5 = scalar_select 0, %s4, %s2
  $region1: #{tpu_custom_call.1} parent=0
    #allocation2 [shape = 'u8[65536]{0}', space=vmem, size = 0x10000, scoped, tag = 'input window, operand 0, single buffered']
    #allocation3 [shape = 's32[1]{0}', space=sflag, size = 0x4, scoped, tag = 'scoped memory for tpu_custom_call.1']
    #allocation4 [shape = 's32[1]{0}', space=sflag, size = 0x4, scoped, tag = 'scoped memory for tpu_custom_call.1']
    #allocation5 [shape = 'u8[32768]{0}', space=vmem, size = 0x8000, scoped, tag = 'output window, operand 0, single buffered']
    %6 = vsyncpa [#allocation3], 0
    %7 = vsyncpa [#allocation4], 0
    // Predicated region
    $region2: #{tpu_custom_call.1} parent=1 // pred_check
      _
    $region3: #{tpu_custom_call.1} parent=1 // pred_check_branch
      %9 = sbr.rel (0) target = $region5
    $region4: #{tpu_custom_call.1} parent=1 // pred_region
      %s11 = ssub.s32 2048, 2048
      %12 = vsyncadd [#allocation3], %s11
      %s13 = sshll.u32 [#allocation2], 4
      %s14 = int_to_ptr.vmem [resolvable:$true] %s13
      %19 = dma.hbm_to_vmem [thread:$0]  %s0, 2048, %s14, [#allocation3], 128, 128, 8
    $region5: #{tpu_custom_call.1} parent=1 // pred_fallthru
      _
    // Predicated region
    $region6: #{tpu_custom_call.1} parent=1 // pred_check
      _
    $region7: #{tpu_custom_call.1} parent=1 // pred_check_branch
      %21 = sbr.rel (0) target = $region9
    $region8: #{tpu_custom_call.1} parent=1 // pred_region
      %22 = dma.done [#allocation3], 2048
    $region9: #{tpu_custom_call.1} parent=1 // pred_fallthru
      _
    %v23 = vld [vmem:[#allocation2 + $0x4] sm:$0xff]
    %v24 = vld [vmem:[#allocation2 + $0x14] sm:$0xff]
    %v25 = vld [vmem:[#allocation2 + $0x24] sm:$0xff]
    %v26 = vld [vmem:[#allocation2 + $0x34] sm:$0xff]
    %v27 = vld [vmem:[#allocation2 + $0x44] sm:$0xff]
    %v28 = vld [vmem:[#allocation2 + $0x54] sm:$0xff]
    %v29 = vld [vmem:[#allocation2 + $0x64] sm:$0xff]
    %v30 = vld [vmem:[#allocation2 + $0x74] sm:$0xff]
    %39 = vrot.lane.b32.xlu0 %v23, 124
    %v40 = vpop.permute.xlu0 %39
    %41 = vrot.lane.b32.xlu0 %v24, 124
    %v42 = vpop.permute.xlu0 %41
    %43 = vrot.lane.b32.xlu0 %v25, 124
    %v44 = vpop.permute.xlu0 %43
    %45 = vrot.lane.b32.xlu0 %v26, 124
    %v46 = vpop.permute.xlu0 %45
    %47 = vrot.lane.b32.xlu0 %v27, 124
    %v48 = vpop.permute.xlu0 %47
    %49 = vrot.lane.b32.xlu0 %v28, 124
    %v50 = vpop.permute.xlu0 %49
    %51 = vrot.lane.b32.xlu0 %v29, 124
    %v52 = vpop.permute.xlu0 %51
    %53 = vrot.lane.b32.xlu0 %v30, 124
    %v54 = vpop.permute.xlu0 %53
    %vm63 = vcmask 64512
    %64 = vst.msk [vmem:[#allocation5] sm:$0xff] %vm63, %v40
    %65 = vst.msk [vmem:[#allocation5 + $0x8] sm:$0xff] %vm63, %v42
    %66 = vst.msk [vmem:[#allocation5 + $0x10] sm:$0xff] %vm63, %v44
    %67 = vst.msk [vmem:[#allocation5 + $0x18] sm:$0xff] %vm63, %v46
    %68 = vst.msk [vmem:[#allocation5 + $0x20] sm:$0xff] %vm63, %v48
    %69 = vst.msk [vmem:[#allocation5 + $0x28] sm:$0xff] %vm63, %v50
    %70 = vst.msk [vmem:[#allocation5 + $0x30] sm:$0xff] %vm63, %v52
    %71 = vst.msk [vmem:[#allocation5 + $0x38] sm:$0xff] %vm63, %v54
    // Predicated region
    $region10: #{tpu_custom_call.1} parent=1 // pred_check
      _
    $region11: #{tpu_custom_call.1} parent=1 // pred_check_branch
      %73 = sbr.rel (0) target = $region13
    $region12: #{tpu_custom_call.1} parent=1 // pred_region
      %s75 = ssub.s32 1024, 1024
      %76 = vsyncadd [#allocation4], %s75
      %s77 = sshll.u32 [#allocation5], 4
      %s78 = int_to_ptr.vmem [resolvable:$true] %s77
      %83 = dma.vmem_to_hbm [thread:$0]  %s78, 1024, %s1, [#allocation4], 128, 128, 8
    $region13: #{tpu_custom_call.1} parent=1 // pred_fallthru
      _
    // Predicated region
    $region14: #{tpu_custom_call.1} parent=1 // pred_check
      _
    $region15: #{tpu_custom_call.1} parent=1 // pred_check_branch
      %85 = sbr.rel (0) target = $region17
    $region16: #{tpu_custom_call.1} parent=1 // pred_region
      %86 = dma.done [#allocation4], 1024
    $region17: #{tpu_custom_call.1} parent=1 // pred_fallthru
      _
    %87 = vsyncpa [#allocation3], 1
    %88 = vsyncpa [#allocation4], 1

</llo_original>
